<compile_context>
chip_gen: v7x
topology: tpu7x:2x2x1
jax: 0.10.0
libtpu: 0.0.40
codegen_flags: <defaults>
</compile_context>

<pallas_src>
import functools

import jax
import jax.numpy as jnp
import numpy as np
from jax.experimental import pallas as pl
from jax.experimental.pallas import tpu as pltpu


# ----------------------------------------------------------------------------
# Fused Pallas kernel
# ----------------------------------------------------------------------------

def _fused_kernel(act_ref, w_ref, b_ref, out_ref, *,
                  G, H, nA, d_x, d_cin, ch, xc_off, woff, boff):
    f32 = jnp.float32
    bf16 = jnp.bfloat16
    GH = G * H

    # ---- activation slab (static lane slices) ----
    x_blk = act_ref[:, 0:G * d_x]                     # (N, G*d_x) block-diag obs||last
    avail = act_ref[:, G * d_x:G * d_x + nA]          # (N, nA)
    x_c = act_ref[:, xc_off:xc_off + d_cin]           # (N, d_cin), rows >= B are 0

    # ---- per-row bias slab (f32) ----
    bg = b_ref[:, boff["bg"]:boff["bg"] + 3 * GH]
    b1 = b_ref[:, boff["b1"]:boff["b1"] + GH]
    bhhn = b_ref[:, boff["bhhn"]:boff["bhhn"] + GH]
    cb1 = b_ref[:, boff["cb1"]:boff["cb1"] + ch]
    cw2 = b_ref[:, boff["cw2"]:boff["cw2"] + ch]
    b2 = b_ref[:, boff["b2"]:boff["b2"] + nA]
    cb2 = b_ref[:, boff["cb2"]:boff["cb2"] + 1]

    # ---- slave fc1: both groups in ONE matmul (block-diag along K and N) ----
    w1 = w_ref[woff["w1"]:woff["w1"] + G * d_x, 0:GH]
    z = jnp.maximum(
        jnp.dot(x_blk.astype(bf16), w1, preferred_element_type=f32) + b1, 0.0)
    # dead lane block per row is exactly 0 (zero weights + zero bias + ReLU)

    # ---- GRU cell with h0 == 0 (input half only); cols = [R | U | N] blocks ----
    wg = w_ref[woff["wg"]:woff["wg"] + GH, 0:3 * GH]
    gates = jnp.dot(z.astype(bf16), wg, preferred_element_type=f32) + bg
    r = jax.nn.sigmoid(gates[:, 0:GH])
    u = jax.nn.sigmoid(gates[:, GH:2 * GH])
    n = jnp.tanh(gates[:, 2 * GH:3 * GH] + r * bhhn)
    h_blk = (1.0 - u) * n                              # (N, GH); dead block == 0

    # ---- fc2 (block-diag) -> un-block via add -> masked softmax ----
    w2 = w_ref[woff["w2"]:woff["w2"] + GH, 0:G * nA]
    lblk = jnp.dot(h_blk.astype(bf16), w2, preferred_element_type=f32)  # (N, G*nA)
    logits = b2
    for g in range(G):                                 # static unroll; dead blocks are 0
        logits = logits + lblk[:, g * nA:(g + 1) * nA]
    h_new = h_blk[:, 0:H]
    for g in range(1, G):
        h_new = h_new + h_blk[:, g * H:(g + 1) * H]

    m = jnp.max(logits, axis=-1, keepdims=True)
    e = jnp.exp(logits - m)
    p = e * pl.reciprocal(jnp.sum(e, axis=-1, keepdims=True), approx=True)
    probs = jnp.where(avail == 0.0, 0.0, p)

    # ---- critic: one matmul + VPU fc2 (multiply + lane reduce) ----
    cw1 = w_ref[woff["cw1"]:woff["cw1"] + d_cin, 0:ch]
    hc = jnp.maximum(
        jnp.dot(x_c.astype(bf16), cw1, preferred_element_type=f32) + cb1, 0.0)
    v = jnp.sum(hc * cw2, axis=-1, keepdims=True) + cb2   # (N, 1); rows < B valid

    # ---- ONE lane-dense 128-lane packed output store ----
    pad_w = out_ref.shape[1] - (nA + H + 1)
    pad = jnp.zeros((probs.shape[0], pad_w), f32)
    out_ref[...] = jnp.concatenate([probs, h_new, v, pad], axis=-1)


# ----------------------------------------------------------------------------
# Model config, raw (PyTorch-like) params
# ----------------------------------------------------------------------------

class Args:
    def __init__(self):
        self.n_slaves = [2, 2]            # two agent groups
        self.n_master = 2
        self.n_agents = sum(self.n_slaves)
        self.obs_shape = 16
        self.n_actions = 8
        self.state_shape = 32
        self.slave_hidden_dim = 32
        self.noise_dim = 8
        self.critic_hidden_dim = 64
        self.last_action = True
        self.reuse_network = True
        self.cuda = False


def init_params(args, key):
    """Deterministic synthetic parameters, PyTorch-module layout."""
    H = args.slave_hidden_dim
    nA = args.n_actions
    params = {"slaves": [], "critic": None}
    keys = jax.random.split(key, len(args.n_slaves) + 1)

    def nrm(k, shape, scale=0.1):
        return (scale * jax.random.normal(k, shape)).astype(jnp.float32)

    for i, n_g in enumerate(args.n_slaves):
        d_in = args.obs_shape
        if args.last_action:
            d_in += nA
        if args.reuse_network:
            d_in += n_g
        ks = jax.random.split(keys[i], 10)
        params["slaves"].append({
            "w1": nrm(ks[0], (d_in, H)),
            "b1": nrm(ks[1], (1, H)),
            "wih": nrm(ks[2], (H, 3 * H)),
            "whh": nrm(ks[3], (H, 3 * H)),
            "bih": nrm(ks[4], (1, 3 * H)),
            "bhh": nrm(ks[5], (1, 3 * H)),
            "w2": nrm(ks[6], (H, nA)),
            "b2": nrm(ks[7], (1, nA)),
        })

    kc = jax.random.split(keys[-1], 4)
    d_cin = args.state_shape + args.n_agents * args.noise_dim
    d_ch = args.critic_hidden_dim
    params["critic"] = {
        "w1": nrm(kc[0], (d_cin, d_ch)),
        "b1": nrm(kc[1], (1, d_ch)),
        "w2": nrm(kc[2], (d_ch, 1)),
        "b2": nrm(kc[3], (1, 1)),
    }
    return params


# ----------------------------------------------------------------------------
# Slab layout + host-side packing
# ----------------------------------------------------------------------------

def _r16(x):
    return ((x + 15) // 16) * 16


def make_layout(args, batch_size):
    """Static (Python int) slab layout shared by pack_params and the kernel."""
    G = len(args.n_slaves)
    n_g = args.n_slaves[0]
    assert all(n == n_g for n in args.n_slaves), "fused path assumes equal-size groups"
    H = args.slave_hidden_dim
    nA = args.n_actions
    d_x = args.obs_shape + (nA if args.last_action else 0)
    GH = G * H
    ch = args.critic_hidden_dim
    d_cin = args.state_shape + args.n_agents * args.noise_dim
    N = G * batch_size * n_g

    # weight slab (bf16): rows 16-aligned per region, lane width 3*GH
    woff, off = {}, 0
    woff["wg"] = off; off = _r16(off + GH)
    woff["w1"] = off; off = _r16(off + G * d_x)
    woff["w2"] = off; off = _r16(off + GH)
    woff["cw1"] = off; off = _r16(off + d_cin)
    w_rows, w_lanes = off, 3 * GH

    # bias slab (f32): N rows, lane regions packed tight, padded to 128-mult
    boff, boffset = {}, 0
    for name, width in (("bg", 3 * GH), ("b1", GH), ("bhhn", GH),
                        ("cb1", ch), ("cw2", ch), ("b2", nA), ("cb2", 1)):
        boff[name] = boffset
        boffset += width
    b_lanes = ((boffset + 127) // 128) * 128

    xc_off, act_lanes, out_lanes = 64, 128, 128
    assert G * d_x + nA <= xc_off and xc_off + d_cin <= act_lanes
    assert nA + H + 1 <= out_lanes
    return dict(G=G, n_g=n_g, H=H, nA=nA, d_x=d_x, GH=GH, ch=ch, d_cin=d_cin,
                N=N, B=batch_size, woff=woff, w_rows=w_rows, w_lanes=w_lanes,
                boff=boff, b_lanes=b_lanes, xc_off=xc_off,
                act_lanes=act_lanes, out_lanes=out_lanes)


def pack_params(args, raw, layout):
    """One-time host-side packing of all parameters into 2 slabs."""
    G, n_g, H, nA = layout["G"], layout["n_g"], layout["H"], layout["nA"]
    d_x, GH, ch, d_cin = layout["d_x"], layout["GH"], layout["ch"], layout["d_cin"]
    N, B = layout["N"], layout["B"]
    woff, boff = layout["woff"], layout["boff"]

    wslab = np.zeros((layout["w_rows"], layout["w_lanes"]), np.float32)
    bslab = np.zeros((N, layout["b_lanes"]), np.float32)

    for g, p in enumerate(raw["slaves"]):
        w1 = np.asarray(p["w1"], np.float32)
        w1_x = w1[:d_x]
        if args.reuse_network:
            w1_id = w1[d_x:d_x + n_g]
        else:
            w1_id = np.zeros((n_g, H), np.float32)
        # fc1: block-diagonal (group-g input block -> group-g output block)
        wslab[woff["w1"] + g * d_x: woff["w1"] + (g + 1) * d_x,
              g * H:(g + 1) * H] = w1_x
        # GRU (h0==0 -> input half only), cols = [R | U | N] with per-group H blocks
        wih = np.asarray(p["wih"], np.float32)
        for k in range(3):
            wslab[woff["wg"] + g * H: woff["wg"] + (g + 1) * H,
                  k * GH + g * H: k * GH + (g + 1) * H] = wih[:, k * H:(k + 1) * H]
        # fc2: block-diagonal
        wslab[woff["w2"] + g * H: woff["w2"] + (g + 1) * H,
              g * nA:(g + 1) * nA] = np.asarray(p["w2"], np.float32)

        # per-row biases (rows group-major; (b, agent-in-group) within a group)
        rows = slice(g * B * n_g, (g + 1) * B * n_g)
        bih = np.asarray(p["bih"], np.float32)[0]
        bhh = np.asarray(p["bhh"], np.float32)[0]
        b1g = np.asarray(p["b1"], np.float32) + np.eye(n_g, dtype=np.float32) @ w1_id
        bslab[rows, boff["b1"] + g * H: boff["b1"] + (g + 1) * H] = np.tile(b1g, (B, 1))
        bslab[rows, boff["bg"] + 0 * GH + g * H: boff["bg"] + 0 * GH + (g + 1) * H] = bih[:H] + bhh[:H]
        bslab[rows, boff["bg"] + 1 * GH + g * H: boff["bg"] + 1 * GH + (g + 1) * H] = bih[H:2 * H] + bhh[H:2 * H]
        bslab[rows, boff["bg"] + 2 * GH + g * H: boff["bg"] + 2 * GH + (g + 1) * H] = bih[2 * H:]
        bslab[rows, boff["bhhn"] + g * H: boff["bhhn"] + (g + 1) * H] = bhh[2 * H:]
        bslab[rows, boff["b2"]: boff["b2"] + nA] = np.asarray(p["b2"], np.float32)

    c = raw["critic"]
    wslab[woff["cw1"]: woff["cw1"] + d_cin, 0:ch] = np.asarray(c["w1"], np.float32)
    bslab[:, boff["cb1"]: boff["cb1"] + ch] = np.asarray(c["b1"], np.float32)
    bslab[:, boff["cw2"]: boff["cw2"] + ch] = np.asarray(c["w2"], np.float32).T
    bslab[:, boff["cb2"]: boff["cb2"] + 1] = np.asarray(c["b2"], np.float32)

    return {"wslab": jnp.asarray(wslab, jnp.bfloat16),   # MXU operands: bf16
            "bslab": jnp.asarray(bslab, jnp.float32)}    # VPU/bias: f32


# ----------------------------------------------------------------------------
# Forward pass (one pallas_call; wrapper work is pure layout plumbing)
# ----------------------------------------------------------------------------

def hams_forward(args, layout, packed, batch, noise_vector, evaluate=False):
    """Returns (action_prob, v_eval, new_hidden).

    action_prob: (B * n_agents, n_actions) masked softmax probs (the tensor fed
    to torch Categorical — not renormalized after masking, matching PyTorch).
    """
    G, n_g, H, nA = layout["G"], layout["n_g"], layout["H"], layout["nA"]
    d_x, d_cin, N, B = layout["d_x"], layout["d_cin"], layout["N"], layout["B"]

    obs = batch["o"].astype(jnp.float32)
    last = batch["last_u_onehot"].astype(jnp.float32)
    avail = batch["avail_u"].astype(jnp.float32)
    state = batch["s"].astype(jnp.float32)

    # --- single (N, 128) activation slab, group-major rows ---
    x_rows, a_rows = [], []
    for g in range(G):
        sl = slice(g * n_g, (g + 1) * n_g)
        parts = [obs[:, sl].reshape(B * n_g, args.obs_shape)]
        if args.last_action:
            parts.append(last[:, sl].reshape(B * n_g, nA))
        xg = jnp.concatenate(parts, axis=-1)                         # (B*n_g, d_x)
        x_rows.append(jnp.pad(xg, ((0, 0), (g * d_x, (G - 1 - g) * d_x))))
        a_rows.append(avail[:, sl].reshape(B * n_g, nA))
    x_blk = jnp.concatenate(x_rows, axis=0)                          # (N, G*d_x)
    avail_rows = jnp.concatenate(a_rows, axis=0)                     # (N, nA)
    noise_flat = jnp.broadcast_to(noise_vector.reshape(1, -1),
                                  (B, args.n_agents * args.noise_dim))
    x_c = jnp.concatenate([state.reshape(B, args.state_shape), noise_flat], axis=-1)

    act = jnp.zeros((N, layout["act_lanes"]), jnp.float32)
    act = act.at[:, 0:G * d_x].set(x_blk)
    act = act.at[:, G * d_x:G * d_x + nA].set(avail_rows)
    act = act.at[:B, layout["xc_off"]:layout["xc_off"] + d_cin].set(x_c)

    kernel = functools.partial(
        _fused_kernel, G=G, H=H, nA=nA, d_x=d_x, d_cin=d_cin, ch=layout["ch"],
        xc_off=layout["xc_off"], woff=layout["woff"], boff=layout["boff"])
    vmem = pl.BlockSpec(memory_space=pltpu.MemorySpace.VMEM)

    out = pl.pallas_call(
        kernel,
        out_shape=jax.ShapeDtypeStruct((N, layout["out_lanes"]), jnp.float32),
        in_specs=[vmem, vmem, vmem],
        out_specs=vmem,
    )(act, packed["wslab"], packed["bslab"])

    # --- split the packed output slab (fused by jit) ---
    probs_rows = out[:, 0:nA]                        # (N, nA) group-major rows
    h_rows = out[:, nA:nA + H]                       # (N, H)
    v_eval = None if evaluate else out[:B, nA + H:nA + H + 1]

    action_prob = (probs_rows.reshape(G, B, n_g, nA)
                   .transpose(1, 0, 2, 3)
                   .reshape(B * args.n_agents, nA))
    new_hidden = [h_rows[g * B * n_g:(g + 1) * B * n_g] for g in range(G)]
    # TODO(synk): torch.distributions.Categorical has no Pallas/JAX equivalent;
    # return the (masked) probability tensor instead.
    return action_prob, v_eval, new_hidden


# ----------------------------------------------------------------------------
# Pure-JAX reference (mirrors the PyTorch math, f32, unpacked params)
# ----------------------------------------------------------------------------

def reference_forward(args, raw, batch, noise_vector):
    state, obs = batch["s"], batch["o"]
    avail = batch["avail_u"].astype(jnp.float32)
    last_u = batch["last_u_onehot"]
    B, H, nA = obs.shape[0], args.slave_hidden_dim, args.n_actions
    outs, idx = [], 0
    for i, n_g in enumerate(args.n_slaves):
        p = raw["slaves"][i]
        o_i = obs[:, idx:idx + n_g].reshape(B * n_g, -1)
        l_i = last_u[:, idx:idx + n_g].reshape(B * n_g, -1)
        idx += n_g
        parts = [o_i]
        if args.last_action:
            parts.append(l_i)
        if args.reuse_network:
            parts.append(jnp.tile(jnp.eye(n_g, dtype=jnp.float32), (B, 1)))
        x = jnp.concatenate(parts, axis=1)
        h = jnp.zeros((B * n_g, H), jnp.float32)
        z = jax.nn.relu(x @ p["w1"] + p["b1"])
        gi = z @ p["wih"] + p["bih"]
        gh = h @ p["whh"] + p["bhh"]
        r = jax.nn.sigmoid(gi[:, :H] + gh[:, :H])
        u = jax.nn.sigmoid(gi[:, H:2 * H] + gh[:, H:2 * H])
        n = jnp.tanh(gi[:, 2 * H:] + r * gh[:, 2 * H:])
        h_new = (1.0 - u) * n + u * h
        outs.append((h_new @ p["w2"] + p["b2"]).reshape(B, n_g, nA))
    output = jnp.concatenate(outs, axis=1)
    prob = jax.nn.softmax(output, axis=-1)
    prob = jnp.where(avail == 0.0, 0.0, prob).reshape(-1, nA)
    c = raw["critic"]
    cx = jnp.concatenate(
        [state.reshape(-1, args.state_shape),
         jnp.broadcast_to(noise_vector.reshape(1, -1),
                          (B, args.n_agents * args.noise_dim))], axis=1)
    v = jax.nn.relu(cx @ c["w1"] + c["b1"]) @ c["w2"] + c["b2"]
    return prob, v


# ----------------------------------------------------------------------------
# main
# ----------------------------------------------------------------------------

if __name__ == "__main__":
    args = Args()
    key = jax.random.PRNGKey(0)
    k_param, k_s, k_o, k_a, k_u, k_n = jax.random.split(key, 6)

    B = 4
    raw_params = init_params(args, k_param)
    layout = make_layout(args, B)
    packed_params = pack_params(args, raw_params, layout)

    batch = {
        "s": jax.random.normal(k_s, (B, args.state_shape), jnp.float32),
        "o": jax.random.normal(k_o, (B, args.n_agents, args.obs_shape), jnp.float32),
        # availability mask: random 0/1 but action 0 always legal
        "avail_u": jnp.concatenate(
            [jnp.ones((B, args.n_agents, 1), jnp.float32),
             (jax.random.uniform(k_a, (B, args.n_agents, args.n_actions - 1))
              > 0.5).astype(jnp.float32)], axis=-1),
        "last_u_onehot": jax.nn.one_hot(
            jax.random.randint(k_u, (B, args.n_agents), 0, args.n_actions),
            args.n_actions, dtype=jnp.float32),
    }
    noise_vector = jax.random.normal(k_n, (args.n_agents, args.noise_dim), jnp.float32)

    # jit the whole forward (evaluate baked statically; layout/args closed over)
    fwd = jax.jit(lambda p, b, nv: hams_forward(args, layout, p, b, nv, evaluate=False))
    action_prob, v_eval, new_hidden = fwd(packed_params, batch, noise_vector)

    jax.block_until_ready(action_prob)
    jax.block_until_ready(v_eval)
    for h in new_hidden:
        jax.block_until_ready(h)

    # shape sanity
    assert action_prob.shape == (B * args.n_agents, args.n_actions)
    assert v_eval.shape == (B, 1)
    # probs are exactly zero wherever avail==0 (mask applied in-kernel)
    avail_flat = batch["avail_u"].reshape(-1, args.n_actions)
    assert bool(jnp.all(jnp.where(avail_flat == 0.0, action_prob, 0.0) == 0.0))
    # numerical check vs pure-JAX f32 reference (kernel uses bf16 MXU operands
    # and an approx-reciprocal softmax denominator)
    ref_prob, ref_v = reference_forward(args, raw_params, batch, noise_vector)
    np.testing.assert_allclose(np.asarray(action_prob), np.asarray(ref_prob),
                               atol=2e-2, rtol=0)
    np.testing.assert_allclose(np.asarray(v_eval), np.asarray(ref_v),
                               atol=2e-2, rtol=0)

    print("KERNEL_OK")
</pallas_src>

<mosaic_0001>
module attributes {stable_mosaic.version = 11 : i64} {
  func.func @_fused_kernel(%arg0: memref<16x128xf32, #tpu.memory_space<vmem>>, %arg1: memref<240x192xbf16, #tpu.memory_space<vmem>>, %arg2: memref<16x512xf32, #tpu.memory_space<vmem>>, %arg3: memref<16x128xf32, #tpu.memory_space<vmem>>) attributes {dimension_semantics = [], scalar_prefetch = 0 : i64, scratch_operands = 0 : i64, tpu.core_type = #tpu.core_type<tc>} {
    %c0 = arith.constant 0 : index
    %c0_0 = arith.constant 0 : index
    %0 = vector.load %arg0[%c0, %c0_0] : memref<16x128xf32, #tpu.memory_space<vmem>>, vector<16x48xf32>
    %c0_1 = arith.constant 0 : index
    %c48 = arith.constant 48 : index
    %1 = vector.load %arg0[%c0_1, %c48] : memref<16x128xf32, #tpu.memory_space<vmem>>, vector<16x8xf32>
    %c0_2 = arith.constant 0 : index
    %c64 = arith.constant 64 : index
    %2 = vector.load %arg0[%c0_2, %c64] : memref<16x128xf32, #tpu.memory_space<vmem>>, vector<16x64xf32>
    %c0_3 = arith.constant 0 : index
    %c0_4 = arith.constant 0 : index
    %3 = vector.load %arg2[%c0_3, %c0_4] : memref<16x512xf32, #tpu.memory_space<vmem>>, vector<16x192xf32>
    %c0_5 = arith.constant 0 : index
    %c192 = arith.constant 192 : index
    %4 = vector.load %arg2[%c0_5, %c192] : memref<16x512xf32, #tpu.memory_space<vmem>>, vector<16x64xf32>
    %c0_6 = arith.constant 0 : index
    %c256 = arith.constant 256 : index
    %5 = vector.load %arg2[%c0_6, %c256] : memref<16x512xf32, #tpu.memory_space<vmem>>, vector<16x64xf32>
    %c0_7 = arith.constant 0 : index
    %c320 = arith.constant 320 : index
    %6 = vector.load %arg2[%c0_7, %c320] : memref<16x512xf32, #tpu.memory_space<vmem>>, vector<16x64xf32>
    %c0_8 = arith.constant 0 : index
    %c384 = arith.constant 384 : index
    %7 = vector.load %arg2[%c0_8, %c384] : memref<16x512xf32, #tpu.memory_space<vmem>>, vector<16x64xf32>
    %c0_9 = arith.constant 0 : index
    %c448 = arith.constant 448 : index
    %8 = vector.load %arg2[%c0_9, %c448] : memref<16x512xf32, #tpu.memory_space<vmem>>, vector<16x8xf32>
    %c0_10 = arith.constant 0 : index
    %c456 = arith.constant 456 : index
    %9 = vector.load %arg2[%c0_10, %c456] : memref<16x512xf32, #tpu.memory_space<vmem>>, vector<16x1xf32>
    %c64_11 = arith.constant 64 : index
    %c0_12 = arith.constant 0 : index
    %10 = vector.load %arg1[%c64_11, %c0_12] : memref<240x192xbf16, #tpu.memory_space<vmem>>, vector<48x64xbf16>
    %11 = arith.truncf %0 : vector<16x48xf32> to vector<16x48xbf16>
    %cst = arith.constant dense<0.000000e+00> : vector<16x64xf32>
    %12 = tpu.matmul %11, %10, %cst {dimension_numbers = #tpu.dot_dimension_numbers<[1], [0], [0], [1], [0, 0, 1, 1], [], []>} : vector<16x48xbf16>, vector<48x64xbf16>, vector<16x64xf32> -> vector<16x64xf32>
    %13 = arith.addf %12, %4 : vector<16x64xf32>
    %cst_13 = arith.constant 0.000000e+00 : f32
    %14 = vector.broadcast %cst_13 : f32 to vector<16x64xf32>
    %15 = arith.maximumf %13, %14 : vector<16x64xf32>
    %c0_14 = arith.constant 0 : index
    %c0_15 = arith.constant 0 : index
    %16 = vector.load %arg1[%c0_14, %c0_15] : memref<240x192xbf16, #tpu.memory_space<vmem>>, vector<64x192xbf16>
    %17 = arith.truncf %15 : vector<16x64xf32> to vector<16x64xbf16>
    %cst_16 = arith.constant dense<0.000000e+00> : vector<16x192xf32>
    %18 = tpu.matmul %17, %16, %cst_16 {dimension_numbers = #tpu.dot_dimension_numbers<[1], [0], [0], [1], [0, 0, 1, 1], [], []>} : vector<16x64xbf16>, vector<64x192xbf16>, vector<16x192xf32> -> vector<16x192xf32>
    %19 = arith.addf %18, %3 : vector<16x192xf32>
    %20 = vector.extract_strided_slice %19 {offsets = [0, 0], sizes = [16, 64], strides = [1, 1]} : vector<16x192xf32> to vector<16x64xf32>
    %21 = arith.negf %20 : vector<16x64xf32>
    %22 = math.exp %21 : vector<16x64xf32>
    %cst_17 = arith.constant 1.000000e+00 : f32
    %23 = vector.broadcast %cst_17 : f32 to vector<16x64xf32>
    %24 = arith.addf %23, %22 : vector<16x64xf32>
    %25 = arith.divf %23, %24 : vector<16x64xf32>
    %26 = vector.extract_strided_slice %19 {offsets = [0, 64], sizes = [16, 64], strides = [1, 1]} : vector<16x192xf32> to vector<16x64xf32>
    %27 = arith.negf %26 : vector<16x64xf32>
    %28 = math.exp %27 : vector<16x64xf32>
    %cst_18 = arith.constant 1.000000e+00 : f32
    %29 = vector.broadcast %cst_18 : f32 to vector<16x64xf32>
    %30 = arith.addf %29, %28 : vector<16x64xf32>
    %31 = arith.divf %29, %30 : vector<16x64xf32>
    %32 = vector.extract_strided_slice %19 {offsets = [0, 128], sizes = [16, 64], strides = [1, 1]} : vector<16x192xf32> to vector<16x64xf32>
    %33 = arith.mulf %25, %5 : vector<16x64xf32>
    %34 = arith.addf %32, %33 : vector<16x64xf32>
    %35 = math.tanh %34 : vector<16x64xf32>
    %cst_19 = arith.constant 1.000000e+00 : f32
    %36 = vector.broadcast %cst_19 : f32 to vector<16x64xf32>
    %37 = arith.subf %36, %31 : vector<16x64xf32>
    %38 = arith.mulf %37, %35 : vector<16x64xf32>
    %c112 = arith.constant 112 : index
    %c0_20 = arith.constant 0 : index
    %39 = vector.load %arg1[%c112, %c0_20] : memref<240x192xbf16, #tpu.memory_space<vmem>>, vector<64x16xbf16>
    %40 = arith.truncf %38 : vector<16x64xf32> to vector<16x64xbf16>
    %cst_21 = arith.constant dense<0.000000e+00> : vector<16x16xf32>
    %41 = tpu.matmul %40, %39, %cst_21 {dimension_numbers = #tpu.dot_dimension_numbers<[1], [0], [0], [1], [0, 0, 1, 1], [], []>} : vector<16x64xbf16>, vector<64x16xbf16>, vector<16x16xf32> -> vector<16x16xf32>
    %42 = vector.extract_strided_slice %41 {offsets = [0, 0], sizes = [16, 8], strides = [1, 1]} : vector<16x16xf32> to vector<16x8xf32>
    %43 = arith.addf %8, %42 : vector<16x8xf32>
    %44 = vector.extract_strided_slice %41 {offsets = [0, 8], sizes = [16, 8], strides = [1, 1]} : vector<16x16xf32> to vector<16x8xf32>
    %45 = arith.addf %43, %44 : vector<16x8xf32>
    %46 = vector.extract_strided_slice %38 {offsets = [0, 0], sizes = [16, 32], strides = [1, 1]} : vector<16x64xf32> to vector<16x32xf32>
    %47 = vector.extract_strided_slice %38 {offsets = [0, 32], sizes = [16, 32], strides = [1, 1]} : vector<16x64xf32> to vector<16x32xf32>
    %48 = arith.addf %46, %47 : vector<16x32xf32>
    %cst_22 = arith.constant dense<0xFF800000> : vector<16xf32>
    %49 = vector.multi_reduction <maximumf>, %45, %cst_22 [1] : vector<16x8xf32> to vector<16xf32>
    %50 = vector.shape_cast %49 : vector<16xf32> to vector<16x1xf32>
    %51 = vector.broadcast %50 : vector<16x1xf32> to vector<16x8xf32>
    %52 = arith.subf %45, %51 : vector<16x8xf32>
    %53 = math.exp %52 : vector<16x8xf32>
    %cst_23 = arith.constant dense<0.000000e+00> : vector<16xf32>
    %54 = vector.multi_reduction <add>, %53, %cst_23 [1] : vector<16x8xf32> to vector<16xf32>
    %55 = vector.shape_cast %54 : vector<16xf32> to vector<16x1xf32>
    %56 = tpu.reciprocal %55 {approx = true} : vector<16x1xf32> -> vector<16x1xf32>
    %57 = vector.broadcast %56 : vector<16x1xf32> to vector<16x8xf32>
    %58 = arith.mulf %53, %57 : vector<16x8xf32>
    %cst_24 = arith.constant 0.000000e+00 : f32
    %59 = vector.broadcast %cst_24 : f32 to vector<16x8xf32>
    %60 = arith.cmpf oeq, %1, %59 : vector<16x8xf32>
    %cst_25 = arith.constant 0.000000e+00 : f32
    %61 = vector.broadcast %cst_25 : f32 to vector<16x8xf32>
    %62 = arith.select %60, %61, %58 : vector<16x8xi1>, vector<16x8xf32>
    %c176 = arith.constant 176 : index
    %c0_26 = arith.constant 0 : index
    %63 = vector.load %arg1[%c176, %c0_26] : memref<240x192xbf16, #tpu.memory_space<vmem>>, vector<64x64xbf16>
    %64 = arith.truncf %2 : vector<16x64xf32> to vector<16x64xbf16>
    %cst_27 = arith.constant dense<0.000000e+00> : vector<16x64xf32>
    %65 = tpu.matmul %64, %63, %cst_27 {dimension_numbers = #tpu.dot_dimension_numbers<[1], [0], [0], [1], [0, 0, 1, 1], [], []>} : vector<16x64xbf16>, vector<64x64xbf16>, vector<16x64xf32> -> vector<16x64xf32>
    %66 = arith.addf %65, %6 : vector<16x64xf32>
    %cst_28 = arith.constant 0.000000e+00 : f32
    %67 = vector.broadcast %cst_28 : f32 to vector<16x64xf32>
    %68 = arith.maximumf %66, %67 : vector<16x64xf32>
    %69 = arith.mulf %68, %7 : vector<16x64xf32>
    %cst_29 = arith.constant dense<0.000000e+00> : vector<16xf32>
    %70 = vector.multi_reduction <add>, %69, %cst_29 [1] : vector<16x64xf32> to vector<16xf32>
    %71 = vector.shape_cast %70 : vector<16xf32> to vector<16x1xf32>
    %72 = arith.addf %71, %9 : vector<16x1xf32>
    %cst_30 = arith.constant 0.000000e+00 : f32
    %73 = vector.broadcast %cst_30 : f32 to vector<16x87xf32>
    %74 = tpu.concatenate %62, %48, %72, %73 in 1 : vector<16x8xf32>, vector<16x32xf32>, vector<16x1xf32>, vector<16x87xf32> -> vector<16x128xf32>
    %c0_31 = arith.constant 0 : index
    %c0_32 = arith.constant 0 : index
    %75 = vector.load %arg3[%c0_31, %c0_32] : memref<16x128xf32, #tpu.memory_space<vmem>>, vector<16x128xf32>
    tpu.vector_store %arg3[%c0_31, %c0_32], %74 {strides = array<i32>} : memref<16x128xf32, #tpu.memory_space<vmem>>, vector<16x128xf32>,
    return
  }
}

</mosaic_0001>

<llo_original>
// kernel: _lambda_.1
$region0: #{_lambda_.1}
  #allocation0 [shape = 'u32[]', space=smem, size = 0x4, offset = 0x4, fixed_abs, tag = 'smem constant byte address 0x4 - core index']
  #allocation1 [shape = 'u32[144,128]{1,0:T(1,128)}', space=vmem, size = 0x12000, scoped, tag = 'internal scratch']
  %s0 = inlined_call_operand.vmem [shape: f32[16,128], index: 0, kind: input, shape index: {}]
  %s1 = inlined_call_operand.vmem [shape: bf16[240,192], index: 1, kind: input, shape index: {}]
  %s2 = inlined_call_operand.vmem [shape: f32[16,512], index: 2, kind: input, shape index: {}]
  %s3 = inlined_call_operand.vmem [shape: f32[16,128], index: 3, kind: output, shape index: {}]
  %s4 = sld [smem:[#allocation0]]
  $region22: #{_lambda_.1} parent=0
    _
  %s6 = ssub.s32 1, %s4
  %s7 = scalar_select 0, %s6, %s4
  // Predicated region
  $region2: #{_lambda_.1} parent=0 // pred_check
    _
  $region3: #{_lambda_.1} parent=0 // pred_check_branch
    %9 = sbr.rel (0) target = $region5
  $region4: #{_lambda_.1} parent=0 // pred_region
    _
  $region5: #{_lambda_.1} parent=0 // pred_fallthru
    _
  // Predicated region
  $region6: #{_lambda_.1} parent=0 // pred_check
    _
  $region7: #{_lambda_.1} parent=0 // pred_check_branch
    %11 = sbr.rel (0) target = $region9
  $region8: #{_lambda_.1} parent=0 // pred_region
    _
  $region9: #{_lambda_.1} parent=0 // pred_fallthru
    _
  // Predicated region
  $region10: #{_lambda_.1} parent=0 // pred_check
    _
  $region11: #{_lambda_.1} parent=0 // pred_check_branch
    %13 = sbr.rel (0) target = $region13
  $region12: #{_lambda_.1} parent=0 // pred_region
    _
  $region13: #{_lambda_.1} parent=0 // pred_fallthru
    _
  %v15 = vld [vmem:[%s0] sm:$0xff]
  %v16 = vld [vmem:[%s0 + $0x8] sm:$0xff]
  %v17 = vld [vmem:[%s2] sm:$0xff]
  %v18 = vld [vmem:[%s2 + $0x8] sm:$0xff]
  %v19 = vld [vmem:[%s2 + $0x20] sm:$0xff]
  %v20 = vld [vmem:[%s2 + $0x28] sm:$0xff]
  %v21 = vld [vmem:[%s2 + $0x10] sm:$0xff]
  %v22 = vld [vmem:[%s2 + $0x30] sm:$0xff]
  %v23 = vld [vmem:[%s2 + $0x18] sm:$0xff]
  %v24 = vld [vmem:[%s2 + $0x38] sm:$0xff]
  %v25 = vld [vmem:[%s1 + $0x40] sm:$0xf]
  %v26 = vld [vmem:[%s1 + $0x48] sm:$0xf]
  %v27 = vld [vmem:[%s1 + $0x50] sm:$0xf]
  %v28 = vld [vmem:[%s1 + $0x58] sm:$0xf]
  %v29 = vld [vmem:[%s1 + $0x60] sm:$0xf]
  %v30 = vld [vmem:[%s1 + $0x68] sm:$0xf]
  %v31 = vpack.c.bf16 %v16, %v15
  %v38 = vunpack.c.l.b16 %v25
  %v39 = vunpack.c.l.b16 %v26
  %v40 = vunpack.c.l.b16 %v27
  %v41 = vunpack.c.l.b16 %v28
  %v42 = vunpack.c.l.b16 %v29
  %v43 = vunpack.c.l.b16 %v30
  %v44 = vpack.c.b16 %v39, %v38
  %v45 = vpack.c.b16 %v41, %v40
  %v46 = vpack.c.b16 %v43, %v42
  %52 = vrot.lane.b32.xlu0 %v18, 64
  %v53 = vpop.permute.xlu0 %52
  %54 = vrot.lane.b32.xlu0 %v20, 64
  %v55 = vpop.permute.xlu0 %54
  %vm58 = vcmask 392192
  %v60 = vsel %vm58, %v31, 0
  %62 = vmatprep.subr.bf16.mxu0 0
  %63 = vmatpush1.bf16.msra.mxu0 %v44
  %64 = vmatprep.subr.bf16.mxu0 0
  %65 = vmatpush1.bf16.msra.mxu0 %v45
  %66 = vmatprep.subr.bf16.mxu0 0
  %67 = vmatpush1.bf16.msra.mxu0 %v46
  %68 = vmatprep.subr.bf16.mxu0 0
  %69 = vmatpush1.bf16.msra.mxu0 0
  %70 = vmatprep.subr.bf16.mxu0 0
  %71 = vmatpush1.bf16.msra.mxu0 0
  %72 = vmatprep.subr.bf16.mxu0 0
  %73 = vmatpush1.bf16.msra.mxu0 0
  %74 = vmatprep.subr.bf16.mxu0 0
  %75 = vmatpush1.bf16.msra.mxu0 0
  %76 = vmatprep.subr.bf16.mxu0 0
  %77 = vmatpush1.bf16.msra.mxu0 0
  %78 = vmatprep.subr.bf16.mxu0 0
  %79 = vmatpush1.bf16.msra.mxu0 0
  %80 = vmatprep.subr.bf16.mxu0 0
  %81 = vmatpush1.bf16.msra.mxu0 0
  %82 = vmatprep.subr.bf16.mxu0 0
  %83 = vmatpush1.bf16.msra.mxu0 0
  %84 = vmatprep.subr.bf16.mxu0 0
  %85 = vmatpush1.bf16.msra.mxu0 0
  %86 = vmatprep.subr.bf16.mxu0 0
  %87 = vmatpush1.bf16.msra.mxu0 0
  %88 = vmatprep.subr.bf16.mxu0 0
  %89 = vmatpush1.bf16.msra.mxu0 0
  %90 = vmatprep.subr.bf16.mxu0 0
  %91 = vmatpush1.bf16.msra.mxu0 0
  %92 = vmatprep.subr.bf16.mxu0 0
  %93 = vmatpush1.bf16.msra.mxu0 0
  %94 = vmatprep.mubr.bf16.mxu0 0
  %95 = vmatmul.mubr.bf16.gmra.mrb[0].mxu0 %v60
  %v96 = vpop.f32.mrb[0].mxu0
  %v97 = vadd.f32 %v53, %v96
  %v98 = vpop.f32.mrb[0].mxu0
  %v99 = vpop.f32.mrb[0].mxu0
  %v100 = vadd.f32 %v55, %v99
  %v101 = vpop.f32.mrb[0].mxu0
  %102 = vdwg.mxu0
  %v103 = vmax.f32 %v97, 0.0
  %v104 = vmax.f32 %v100, 0.0
  %v105 = vld [vmem:[%s1] sm:$0xff]
  %v106 = vld [vmem:[%s1 + $0x8] sm:$0xff]
  %v107 = vld [vmem:[%s1 + $0x10] sm:$0xff]
  %v108 = vld [vmem:[%s1 + $0x18] sm:$0xff]
  %v109 = vld [vmem:[%s1 + $0x20] sm:$0xff]
  %v110 = vld [vmem:[%s1 + $0x28] sm:$0xff]
  %v111 = vld [vmem:[%s1 + $0x30] sm:$0xff]
  %v112 = vld [vmem:[%s1 + $0x38] sm:$0xff]
  %v113 = vpack.c.bf16 %v104, %v103
  %v122 = vunpack.c.l.b16 %v105
  %v123 = vunpack.c.h.b16 %v105
  %v124 = vunpack.c.l.b16 %v106
  %v125 = vunpack.c.h.b16 %v106
  %v126 = vunpack.c.l.b16 %v107
  %v127 = vunpack.c.h.b16 %v107
  %v128 = vunpack.c.l.b16 %v108
  %v129 = vunpack.c.h.b16 %v108
  %v130 = vunpack.c.l.b16 %v109
  %v131 = vunpack.c.h.b16 %v109
  %v132 = vunpack.c.l.b16 %v110
  %v133 = vunpack.c.h.b16 %v110
  %v134 = vunpack.c.l.b16 %v111
  %v135 = vunpack.c.h.b16 %v111
  %v136 = vunpack.c.l.b16 %v112
  %v137 = vunpack.c.h.b16 %v112
  %v138 = vpack.c.b16 %v124, %v122
  %v139 = vpack.c.b16 %v125, %v123
  %v140 = vpack.c.b16 %v128, %v126
  %v141 = vpack.c.b16 %v129, %v127
  %v142 = vpack.c.b16 %v132, %v130
  %v143 = vpack.c.b16 %v133, %v131
  %v144 = vpack.c.b16 %v136, %v134
  %v145 = vpack.c.b16 %v137, %v135
  %vm154 = vcmask 523264
  %v156 = vsel %vm154, %v113, 0
  %158 = vmatprep.subr.bf16.mxu0 %v139
  %159 = vmatpush1.bf16.msra.mxu0 %v138
  %160 = vmatprep.subr.bf16.mxu0 %v141
  %161 = vmatpush1.bf16.msra.mxu0 %v140
  %162 = vmatprep.subr.bf16.mxu0 %v143
  %163 = vmatpush1.bf16.msra.mxu0 %v142
  %164 = vmatprep.subr.bf16.mxu0 %v145
  %165 = vmatpush1.bf16.msra.mxu0 %v144
  %166 = vmatprep.subr.bf16.mxu0 0
  %167 = vmatpush1.bf16.msra.mxu0 0
  %168 = vmatprep.subr.bf16.mxu0 0
  %169 = vmatpush1.bf16.msra.mxu0 0
  %170 = vmatprep.subr.bf16.mxu0 0
  %171 = vmatpush1.bf16.msra.mxu0 0
  %172 = vmatprep.subr.bf16.mxu0 0
  %173 = vmatpush1.bf16.msra.mxu0 0
  %174 = vmatprep.subr.bf16.mxu0 0
  %175 = vmatpush1.bf16.msra.mxu0 0
  %176 = vmatprep.subr.bf16.mxu0 0
  %177 = vmatpush1.bf16.msra.mxu0 0
  %178 = vmatprep.subr.bf16.mxu0 0
  %179 = vmatpush1.bf16.msra.mxu0 0
  %180 = vmatprep.subr.bf16.mxu0 0
  %181 = vmatpush1.bf16.msra.mxu0 0
  %182 = vmatprep.subr.bf16.mxu0 0
  %183 = vmatpush1.bf16.msra.mxu0 0
  %184 = vmatprep.subr.bf16.mxu0 0
  %185 = vmatpush1.bf16.msra.mxu0 0
  %186 = vmatprep.subr.bf16.mxu0 0
  %187 = vmatpush1.bf16.msra.mxu0 0
  %188 = vmatprep.subr.bf16.mxu0 0
  %189 = vmatpush1.bf16.msra.mxu0 0
  %190 = vmatprep.mubr.bf16.mxu0 0
  %191 = vmatmul.mubr.bf16.gmra.mrb[0].mxu0 %v156
  %v192 = vpop.f32.mrb[0].mxu0
  %v193 = vadd.f32 %v17, %v192
  %v194 = vpop.f32.mrb[0].mxu0
  %v195 = vadd.f32 %v18, %v194
  %v196 = vpop.f32.mrb[0].mxu0
  %v197 = vadd.f32 %v19, %v196
  %v198 = vpop.f32.mrb[0].mxu0
  %v199 = vadd.f32 %v20, %v198
  %200 = vdwg.mxu0
  %v201 = vxor.u32 %v193, 2147483648
  %v202 = vxor.u32 %v197, 2147483648
  %v203 = vmul.f32 %v201, 1.442695
  %v204 = vpow.pop %v203
  %v205 = vmul.f32 %v202, 1.442695
  %v206 = vpow.pop %v205
  %v207 = vadd.f32 %v204, 1.0
  %v208 = vadd.f32 %v206, 1.0
  %v209 = vrcp.pop %v207
  %v210 = vmul.f32 1.0, %v209
  %v211 = vrcp.pop %v208
  %v212 = vmul.f32 1.0, %v211
  %v213 = vmul.f32 %v210, %v21
  %v214 = vmul.f32 %v212, %v22
  %v215 = vadd.f32 %v195, %v213
  %v216 = vadd.f32 %v199, %v214
  %v217 = vtanh.pop %v215
  %v218 = vtanh.pop %v216
  %v219 = vsub.f32 1.0, %v210
  %v220 = vsub.f32 1.0, %v212
  %223 = vrot.lane.b32.xlu0 %v217, 64
  %v224 = vpop.permute.xlu0 %223
  %225 = vrot.lane.b32.xlu0 %v218, 64
  %v226 = vpop.permute.xlu0 %225
  %v229 = vmul.f32 %v219, %v224
  %v230 = vmul.f32 %v220, %v226
  %v231 = vld [vmem:[%s1 + $0x70] sm:$0xf]
  %v232 = vld [vmem:[%s1 + $0x78] sm:$0xf]
  %v233 = vld [vmem:[%s1 + $0x80] sm:$0xf]
  %v234 = vld [vmem:[%s1 + $0x88] sm:$0xf]
  %v235 = vld [vmem:[%s1 + $0x90] sm:$0xf]
  %v236 = vld [vmem:[%s1 + $0x98] sm:$0xf]
  %v237 = vld [vmem:[%s1 + $0xa0] sm:$0xf]
  %v238 = vld [vmem:[%s1 + $0xa8] sm:$0xf]
  %v239 = vpack.c.bf16 %v230, %v229
  %241 = vrot.lane.b32.xlu0 %v239, 64
  %v242 = vpop.permute.xlu0 %241
  %v251 = vunpack.c.l.b16 %v231
  %v252 = vunpack.c.l.b16 %v232
  %v253 = vunpack.c.l.b16 %v233
  %v254 = vunpack.c.l.b16 %v234
  %v255 = vunpack.c.l.b16 %v235
  %v256 = vunpack.c.l.b16 %v236
  %v257 = vunpack.c.l.b16 %v237
  %v258 = vunpack.c.l.b16 %v238
  %v259 = vpack.c.b16 %v252, %v251
  %v260 = vpack.c.b16 %v254, %v253
  %v261 = vpack.c.b16 %v256, %v255
  %v262 = vpack.c.b16 %v258, %v257
  %v268 = vsel %vm154, %v242, 0
  %270 = vmatprep.subr.bf16.mxu0 0
  %271 = vmatpush1.bf16.msra.mxu0 %v259
  %272 = vmatprep.subr.bf16.mxu0 0
  %273 = vmatpush1.bf16.msra.mxu0 %v260
  %274 = vmatprep.subr.bf16.mxu0 0
  %275 = vmatpush1.bf16.msra.mxu0 %v261
  %276 = vmatprep.subr.bf16.mxu0 0
  %277 = vmatpush1.bf16.msra.mxu0 %v262
  %278 = vmatprep.subr.bf16.mxu0 0
  %279 = vmatpush1.bf16.msra.mxu0 0
  %280 = vmatprep.subr.bf16.mxu0 0
  %281 = vmatpush1.bf16.msra.mxu0 0
  %282 = vmatprep.subr.bf16.mxu0 0
  %283 = vmatpush1.bf16.msra.mxu0 0
  %284 = vmatprep.subr.bf16.mxu0 0
  %285 = vmatpush1.bf16.msra.mxu0 0
  %286 = vmatprep.subr.bf16.mxu0 0
  %287 = vmatpush1.bf16.msra.mxu0 0
  %288 = vmatprep.subr.bf16.mxu0 0
  %289 = vmatpush1.bf16.msra.mxu0 0
  %290 = vmatprep.subr.bf16.mxu0 0
  %291 = vmatpush1.bf16.msra.mxu0 0
  %292 = vmatprep.subr.bf16.mxu0 0
  %293 = vmatpush1.bf16.msra.mxu0 0
  %294 = vmatprep.subr.bf16.mxu0 0
  %295 = vmatpush1.bf16.msra.mxu0 0
  %296 = vmatprep.subr.bf16.mxu0 0
  %297 = vmatpush1.bf16.msra.mxu0 0
  %298 = vmatprep.subr.bf16.mxu0 0
  %299 = vmatpush1.bf16.msra.mxu0 0
  %300 = vmatprep.subr.bf16.mxu0 0
  %301 = vmatpush1.bf16.msra.mxu0 0
  %302 = vmatprep.mubr.bf16.mxu0 0
  %303 = vmatmul.mubr.bf16.gmra.mrb[0].mxu0 %v268
  %v304 = vpop.f32.mrb[0].mxu0
  %v305 = vadd.f32 0.0, %v304
  %v306 = vpop.f32.mrb[0].mxu0
  %v307 = vpop.f32.mrb[0].mxu0
  %v308 = vadd.f32 0.0, %v307
  %v309 = vpop.f32.mrb[0].mxu0
  %310 = vdwg.mxu0
  %313 = vrot.lane.b32.xlu0 %v305, 64
  %v314 = vpop.permute.xlu0 %313
  %315 = vrot.lane.b32.xlu0 %v308, 64
  %v316 = vpop.permute.xlu0 %315
  %v319 = vadd.f32 %v23, %v314
  %v320 = vadd.f32 %v24, %v316
  %321 = vrot.lane.b32.xlu0 %v305, 56
  %v322 = vpop.permute.xlu0 %321
  %323 = vrot.lane.b32.xlu0 %v308, 56
  %v324 = vpop.permute.xlu0 %323
  %v327 = vadd.f32 %v319, %v322
  %v328 = vadd.f32 %v320, %v324
  %331 = vrot.lane.b32.xlu0 %v229, 96
  %v332 = vpop.permute.xlu0 %331
  %333 = vrot.lane.b32.xlu0 %v230, 96
  %v334 = vpop.permute.xlu0 %333
  %v337 = vadd.f32 %v229, %v332
  %v338 = vadd.f32 %v230, %v334
  %vm339 = vcmask 589312
  %v340 = vsel %vm339, %v327, -inf
  %341 = vmax.xlane.f32.xlu0 %v340
  %v342 = vpop.xlane.xlu0 %341
  %v343 = vsel %vm339, %v328, -inf
  %344 = vmax.xlane.f32.xlu0 %v343
  %v345 = vpop.xlane.xlu0 %344
  %v346 = vsub.f32 %v327, %v342
  %v347 = vsub.f32 %v328, %v345
  %v348 = vmul.f32 %v346, 1.442695
  %v349 = vpow.pop %v348
  %v350 = vmul.f32 %v347, 1.442695
  %v351 = vpow.pop %v350
  %354 = vrot.lane.b32.xlu0 %v349, 64
  %v355 = vpop.permute.xlu0 %354
  %356 = vrot.lane.b32.xlu0 %v351, 64
  %v357 = vpop.permute.xlu0 %356
  %vm360 = vcmask 64512
  %v361 = vsel %vm360, %v355, 0.0
  %362 = vadd.xlane.f32.xlu0 %v361
  %v363 = vpop.xlane.xlu0 %362
  %v364 = vsel %vm360, %v357, 0.0
  %365 = vadd.xlane.f32.xlu0 %v364
  %v366 = vpop.xlane.xlu0 %365
  %v367 = vrcp.pop %v363
  %v368 = vrcp.pop %v366
  %v369 = vmul.f32 %v349, %v367
  %v370 = vmul.f32 %v351, %v368
  %vm371 = vcmp.eq.f32.partialorder %v15, 0.0
  %vm372 = vcmp.eq.f32.partialorder %v16, 0.0
  %375 = vrot.lane.b32.xlu0 %v369, 112
  %v376 = vpop.permute.xlu0 %375
  %377 = vrot.lane.b32.xlu0 %v370, 112
  %v378 = vpop.permute.xlu0 %377
  %v381 = vsel %vm371, 0.0, %v376
  %v382 = vsel %vm372, 0.0, %v378
  %v383 = vld [vmem:[%s1 + $0xb0] sm:$0xf]
  %v384 = vld [vmem:[%s1 + $0xb8] sm:$0xf]
  %v385 = vld [vmem:[%s1 + $0xc0] sm:$0xf]
  %v386 = vld [vmem:[%s1 + $0xc8] sm:$0xf]
  %v387 = vld [vmem:[%s1 + $0xd0] sm:$0xf]
  %v388 = vld [vmem:[%s1 + $0xd8] sm:$0xf]
  %v389 = vld [vmem:[%s1 + $0xe0] sm:$0xf]
  %v390 = vld [vmem:[%s1 + $0xe8] sm:$0xf]
  %392 = vrot.lane.b32.xlu0 %v31, 64
  %v393 = vpop.permute.xlu0 %392
  %v402 = vunpack.c.l.b16 %v383
  %v403 = vunpack.c.l.b16 %v384
  %v404 = vunpack.c.l.b16 %v385
  %v405 = vunpack.c.l.b16 %v386
  %v406 = vunpack.c.l.b16 %v387
  %v407 = vunpack.c.l.b16 %v388
  %v408 = vunpack.c.l.b16 %v389
  %v409 = vunpack.c.l.b16 %v390
  %v410 = vpack.c.b16 %v403, %v402
  %v411 = vpack.c.b16 %v405, %v404
  %v412 = vpack.c.b16 %v407, %v406
  %v413 = vpack.c.b16 %v409, %v408
  %420 = vrot.lane.b32.xlu0 %v21, 64
  %v421 = vpop.permute.xlu0 %420
  %422 = vrot.lane.b32.xlu0 %v22, 64
  %v423 = vpop.permute.xlu0 %422
  %v427 = vsel %vm154, %v393, 0
  %429 = vmatprep.subr.bf16.mxu0 0
  %430 = vmatpush1.bf16.msra.mxu0 %v410
  %431 = vmatprep.subr.bf16.mxu0 0
  %432 = vmatpush1.bf16.msra.mxu0 %v411
  %433 = vmatprep.subr.bf16.mxu0 0
  %434 = vmatpush1.bf16.msra.mxu0 %v412
  %435 = vmatprep.subr.bf16.mxu0 0
  %436 = vmatpush1.bf16.msra.mxu0 %v413
  %437 = vmatprep.subr.bf16.mxu0 0
  %438 = vmatpush1.bf16.msra.mxu0 0
  %439 = vmatprep.subr.bf16.mxu0 0
  %440 = vmatpush1.bf16.msra.mxu0 0
  %441 = vmatprep.subr.bf16.mxu0 0
  %442 = vmatpush1.bf16.msra.mxu0 0
  %443 = vmatprep.subr.bf16.mxu0 0
  %444 = vmatpush1.bf16.msra.mxu0 0
  %445 = vmatprep.subr.bf16.mxu0 0
  %446 = vmatpush1.bf16.msra.mxu0 0
  %447 = vmatprep.subr.bf16.mxu0 0
  %448 = vmatpush1.bf16.msra.mxu0 0
  %449 = vmatprep.subr.bf16.mxu0 0
  %450 = vmatpush1.bf16.msra.mxu0 0
  %451 = vmatprep.subr.bf16.mxu0 0
  %452 = vmatpush1.bf16.msra.mxu0 0
  %453 = vmatprep.subr.bf16.mxu0 0
  %454 = vmatpush1.bf16.msra.mxu0 0
  %455 = vmatprep.subr.bf16.mxu0 0
  %456 = vmatpush1.bf16.msra.mxu0 0
  %457 = vmatprep.subr.bf16.mxu0 0
  %458 = vmatpush1.bf16.msra.mxu0 0
  %459 = vmatprep.subr.bf16.mxu0 0
  %460 = vmatpush1.bf16.msra.mxu0 0
  %461 = vmatprep.mubr.bf16.mxu0 0
  %462 = vmatmul.mubr.bf16.gmra.mrb[0].mxu0 %v427
  %v463 = vpop.f32.mrb[0].mxu0
  %v464 = vadd.f32 %v421, %v463
  %v465 = vpop.f32.mrb[0].mxu0
  %v466 = vpop.f32.mrb[0].mxu0
  %v467 = vadd.f32 %v423, %v466
  %v468 = vpop.f32.mrb[0].mxu0
  %469 = vdwg.mxu0
  %v470 = vmax.f32 %v464, 0.0
  %v471 = vmax.f32 %v467, 0.0
  %v472 = vmul.f32 %v470, %v23
  %v473 = vmul.f32 %v471, %v24
  %v474 = vsel %vm154, %v472, 0.0
  %475 = vadd.xlane.f32.xlu0 %v474
  %v476 = vpop.xlane.xlu0 %475
  %v477 = vsel %vm154, %v473, 0.0
  %478 = vadd.xlane.f32.xlu0 %v477
  %v479 = vpop.xlane.xlu0 %478
  %v480 = vadd.f32 %v476, %v23
  %v481 = vadd.f32 %v479, %v24
  %484 = vrot.lane.b32.xlu0 %v381, 80
  %v485 = vpop.permute.xlu0 %484
  %486 = vrot.lane.b32.xlu0 %v382, 80
  %v487 = vpop.permute.xlu0 %486
  %492 = vrot.lane.b32.xlu0 %v337, 72
  %v493 = vpop.permute.xlu0 %492
  %494 = vrot.lane.b32.xlu0 %v338, 72
  %v495 = vpop.permute.xlu0 %494
  %500 = vrot.lane.b32.xlu0 %v480, 96
  %v501 = vpop.permute.xlu0 %500
  %502 = vrot.lane.b32.xlu0 %v481, 96
  %v503 = vpop.permute.xlu0 %502
  %v506 = vsel %vm360, %v485, %v493
  %v507 = vsel %vm360, %v487, %v495
  %vm508 = vcmask 326656
  %v509 = vsel %vm508, %v506, %v501
  %v510 = vsel %vm508, %v507, %v503
  %vm511 = vcmask 334848
  %v512 = vsel %vm511, %v509, 0.0
  %v513 = vsel %vm511, %v510, 0.0
  %514 = vst [vmem:[%s3] sm:$0xff] %v512
  %515 = vst [vmem:[%s3 + $0x8] sm:$0xff] %v513
  // Predicated region
  $region14: #{_lambda_.1} parent=0 // pred_check
    _
  $region15: #{_lambda_.1} parent=0 // pred_check_branch
    %517 = sbr.rel (0) target = $region17
  $region16: #{_lambda_.1} parent=0 // pred_region
    _
  $region17: #{_lambda_.1} parent=0 // pred_fallthru
    _
  // Predicated region
  $region18: #{_lambda_.1} parent=0 // pred_check
    _
  $region19: #{_lambda_.1} parent=0 // pred_check_branch
    %519 = sbr.rel (0) target = $region21
  $region20: #{_lambda_.1} parent=0 // pred_region
    _
  $region21: #{_lambda_.1} parent=0 // pred_fallthru
    _

</llo_original>
